<compile_context>
chip_gen: v7x
topology: tpu7x:2x2x1
jax: 0.10.0
libtpu: 0.0.40
codegen_flags: <defaults>
</compile_context>

<pallas_src>
import functools

import numpy as np

import jax
import jax.numpy as jnp
from jax.experimental import pallas as pl
from jax.experimental.pallas import tpu as pltpu

MAX_TILE_P = 32768                 # pixels per grid step (lane axis), mult. of 128
NSPLIT = 2                         # parallel pixel-range splits per image (v7x)
VMEM_LIMIT_BYTES = 48 * 1024 * 1024


def _round_up(x, m):
    return ((x + m - 1) // m) * m


def _cdiv(a, b):
    return -(-a // b)


# ----------------------------------------------------------------------------
# Pallas kernel: masked cross-entropy tile sums, binned per pyramid scale
# ----------------------------------------------------------------------------
def _ce_sum_kernel(sid_ref, logits_ref, labels_ref, out_ref, *,
                   ignore_index, tiles_per_split):
    s = pl.program_id(1)            # pixel-range split within the image
    t = pl.program_id(2)            # reduction step within the split

    @pl.when(t == 0)
    def _():
        out_ref[...] = jnp.zeros_like(out_ref)

    x = logits_ref[0].astype(jnp.float32)     # (C, TILE_P): pixels on lanes
    lab = labels_ref[0]                       # (1, TILE_P) int32
    valid = lab != ignore_index               # padded tails carry ignore_index

    # Stable log-sum-exp over the short, leading class axis (sublane reduces).
    m = jnp.max(x, axis=0, keepdims=True)                   # (1, TILE_P)
    xm = x - m
    ssum = jnp.sum(jnp.exp(xm), axis=0, keepdims=True)      # (1, TILE_P)

    # Target-class gather via iota compare, reusing xm (no second x - m pass):
    #   lse - x[target] == log(ssum) - (x[target] - m)
    cls = jax.lax.broadcasted_iota(jnp.int32, x.shape, 0)
    picked = jnp.sum(jnp.where(cls == lab, xm, 0.0), axis=0, keepdims=True)

    loss = jnp.where(valid, jnp.log(ssum) - picked, 0.0)    # (1, TILE_P)

    # Bin this tile's loss-sum into the lane of its pyramid scale.
    tile_sum = jnp.sum(loss)
    sid = sid_ref[s * tiles_per_split + t]                  # SMEM scalar lookup
    lane = jax.lax.broadcasted_iota(jnp.int32, out_ref.shape, 2)
    out_ref[...] += jnp.where(lane == sid, tile_sum, 0.0)


# ----------------------------------------------------------------------------
# Resize helpers (PyTorch F.interpolate semantics), built at trace time
# ----------------------------------------------------------------------------
def _bilinear_matrix(in_size, out_size):
    """PyTorch bilinear (align_corners=False) resize as an (out, in) matrix."""
    scale = in_size / out_size
    j = np.arange(out_size, dtype=np.float64)
    src = np.maximum((j + 0.5) * scale - 0.5, 0.0)
    i0 = np.minimum(np.floor(src).astype(np.int64), in_size - 1)
    i1 = np.minimum(i0 + 1, in_size - 1)
    w1 = src - i0
    w0 = 1.0 - w1
    a = np.zeros((out_size, in_size), dtype=np.float32)
    a[np.arange(out_size), i0] += w0
    a[np.arange(out_size), i1] += w1
    return a


def _nearest_indices(in_size, out_size):
    """PyTorch 'nearest' source indices: floor(dst * in/out), clamped."""
    idx = np.floor(np.arange(out_size, dtype=np.float64) * (in_size / out_size))
    return np.minimum(idx.astype(np.int64), in_size - 1)


# ----------------------------------------------------------------------------
# PyramidLoss forward
# ----------------------------------------------------------------------------
def pyramid_loss(logits_4d, labels_3d, num_classes=21, ignore_index=255,
                 scales=(0.25, 0.5, 0.75, 1.0)):
    N, C, H, W = logits_4d.shape
    del num_classes  # implied by C; kept for API parity with the PyTorch module

    labels = labels_3d.astype(jnp.int32)
    # bf16 logits in HBM halve the dominant DMA stream; in-kernel math is f32.
    xb = logits_4d.astype(jnp.bfloat16)

    # ---- pyramid segments: full resolution + every non-1.0 scale ------------
    seg_logits = [xb]            # each (N, C, nh, nw)
    seg_labels = [labels]        # each (N, nh, nw)
    seg_shapes = [(H, W)]
    for s in scales:
        if s == 1.0:
            continue
        assert s <= 1.0
        nh, nw = int(s * H), int(s * W)
        # Bilinear resize as two small matmuls (MXU), no gather intermediates.
        ah = _bilinear_matrix(H, nh)                     # (nh, H)
        aw = _bilinear_matrix(W, nw)                     # (nw, W)
        tmp = jnp.einsum('ph,nchw->ncpw', ah, xb)
        res = jnp.einsum('ncpw,qw->ncpq', tmp, aw)
        seg_logits.append(res.astype(jnp.bfloat16))
        hs = _nearest_indices(H, nh)
        ws = _nearest_indices(W, nw)
        seg_labels.append(labels[:, hs, :][:, :, ws])
        seg_shapes.append((nh, nw))
    n_seg = len(seg_shapes)
    assert n_seg <= 128

    # ---- one lane-dense pixel stream per image, all scales concatenated -----
    total_px = sum(h * w for h, w in seg_shapes)
    tile_p = min(MAX_TILE_P, _round_up(max(_cdiv(total_px, NSPLIT), 1), 128))

    cat_logits, cat_labels, sid_list = [], [], []
    for k, (h, w) in enumerate(seg_shapes):
        p = h * w
        p_pad = _round_up(p, tile_p)
        lg = seg_logits[k].reshape(N, C, p)
        lb = seg_labels[k].reshape(N, 1, p)
        if p_pad > p:   # pad tails with ignore-labelled pixels (masked in-kernel)
            lg = jnp.pad(lg, ((0, 0), (0, 0), (0, p_pad - p)))
            lb = jnp.pad(lb, ((0, 0), (0, 0), (0, p_pad - p)),
                         constant_values=ignore_index)
        cat_logits.append(lg)
        cat_labels.append(lb)
        sid_list += [k] * (p_pad // tile_p)

    n_split = NSPLIT                              # >= 2 work items / image (v7x)
    tiles_per_split = _cdiv(len(sid_list), n_split)
    total_tiles = n_split * tiles_per_split
    if total_tiles > len(sid_list):               # equalize split lengths
        extra = (total_tiles - len(sid_list)) * tile_p
        cat_logits.append(jnp.zeros((N, C, extra), jnp.bfloat16))
        cat_labels.append(jnp.full((N, 1, extra), ignore_index, jnp.int32))
        sid_list += [n_seg] * (total_tiles - len(sid_list))

    x_cat = jnp.concatenate(cat_logits, axis=-1)       # (N, C, P) bf16
    lab_cat = jnp.concatenate(cat_labels, axis=-1)     # (N, 1, P) int32
    sid = jnp.asarray(np.asarray(sid_list, dtype=np.int32))

    # ---- single pallas_call over every image / scale / pixel tile -----------
    kernel = functools.partial(_ce_sum_kernel, ignore_index=ignore_index,
                               tiles_per_split=tiles_per_split)

    def _in_map(n, s, t, sid_ref):
        return (n, 0, s * tiles_per_split + t)

    partial_sums = pl.pallas_call(
        kernel,
        out_shape=jax.ShapeDtypeStruct((N * n_split, 8, 128), jnp.float32),
        grid_spec=pltpu.PrefetchScalarGridSpec(
            num_scalar_prefetch=1,
            grid=(N, n_split, tiles_per_split),
            in_specs=[pl.BlockSpec((1, C, tile_p), _in_map),
                      pl.BlockSpec((1, 1, tile_p), _in_map)],
            out_specs=pl.BlockSpec(
                (1, 8, 128), lambda n, s, t, sid_ref: (n * n_split + s, 0, 0)),
        ),
        compiler_params=pltpu.CompilerParams(
            dimension_semantics=("parallel", "parallel", "arbitrary"),
            vmem_limit_bytes=VMEM_LIMIT_BYTES),
    )(sid, x_cat, lab_cat)

    # ---- per-scale mean + average over scales (counts via cheap XLA sums) ---
    per_scale_sum = jnp.sum(partial_sums[:, 0, :], axis=0)[:n_seg]
    per_scale_cnt = jnp.stack(
        [jnp.sum((l != ignore_index).astype(jnp.float32)) for l in seg_labels])
    # NOTE: a scale with zero valid pixels yields NaN, same as F.cross_entropy.
    total = jnp.sum(per_scale_sum / per_scale_cnt)
    return total / len(scales)


if __name__ == "__main__":
    key = jax.random.PRNGKey(0)
    k1, k2, k3 = jax.random.split(key, 3)

    N, C, H, W = 2, 21, 16, 16          # num_classes=21 (module default)
    logits = jax.random.normal(k1, (N, C, H, W), dtype=jnp.float32)
    labels = jax.random.randint(k2, (N, H, W), 0, C, dtype=jnp.int32)
    # sprinkle some ignore_index=255 pixels to exercise the mask
    ignore_mask = jax.random.uniform(k3, (N, H, W)) < 0.1
    labels = jnp.where(ignore_mask, jnp.int32(255), labels)

    loss = jax.jit(pyramid_loss)(logits, labels)
    jax.block_until_ready(loss)
    print("KERNEL_OK")
</pallas_src>

<mosaic_0001>
module attributes {stable_mosaic.version = 11 : i64} {
  func.func @_ce_sum_kernel(%arg0: i32, %arg1: i32, %arg2: i32, %arg3: memref<4xi32, #tpu.memory_space<smem>>, %arg4: memref<1x21x256xbf16, #tpu.memory_space<vmem>>, %arg5: memref<1x1x256xi32, #tpu.memory_space<vmem>>, %arg6: memref<1x8x128xf32, #tpu.memory_space<vmem>>) attributes {dimension_semantics = [#tpu.dimension_semantics<parallel>, #tpu.dimension_semantics<parallel>, #tpu.dimension_semantics<arbitrary>], iteration_bounds = array<i64: 2, 2, 2>, scalar_prefetch = 1 : i64, scratch_operands = 0 : i64, tpu.core_type = #tpu.core_type<tc>, window_params = [{transform_indices = @transform_0, window_bounds = array<i64: 1, 21, 256>}, {transform_indices = @transform_1, window_bounds = array<i64: 1, 1, 256>}, {transform_indices = @transform_2, window_bounds = array<i64: 1, 8, 128>}]} {
    %c0_i32 = arith.constant 0 : i32
    %0 = arith.cmpi eq, %arg2, %c0_i32 : i32
    %1 = arith.extui %0 : i1 to i32
    %c0_i32_0 = arith.constant 0 : i32
    %2 = arith.cmpi ne, %1, %c0_i32_0 : i32
    scf.if %2 {
      %cst_18 = arith.constant 0.000000e+00 : f32
      %45 = vector.broadcast %cst_18 : f32 to vector<1x8x128xf32>
      %c0_19 = arith.constant 0 : index
      %c0_20 = arith.constant 0 : index
      %c0_21 = arith.constant 0 : index
      %46 = vector.load %arg6[%c0_19, %c0_20, %c0_21] : memref<1x8x128xf32, #tpu.memory_space<vmem>>, vector<1x8x128xf32>
      tpu.vector_store %arg6[%c0_19, %c0_20, %c0_21], %45 {strides = array<i32>} : memref<1x8x128xf32, #tpu.memory_space<vmem>>, vector<1x8x128xf32>,
    } else {
    }
    %c0 = arith.constant 0 : index
    %c0_1 = arith.constant 0 : index
    %c0_2 = arith.constant 0 : index
    %3 = vector.load %arg4[%c0, %c0_1, %c0_2] : memref<1x21x256xbf16, #tpu.memory_space<vmem>>, vector<1x21x256xbf16>
    %4 = vector.shape_cast %3 : vector<1x21x256xbf16> to vector<21x256xbf16>
    %5 = arith.extf %4 : vector<21x256xbf16> to vector<21x256xf32>
    %c0_3 = arith.constant 0 : index
    %c0_4 = arith.constant 0 : index
    %c0_5 = arith.constant 0 : index
    %6 = vector.load %arg5[%c0_3, %c0_4, %c0_5] : memref<1x1x256xi32, #tpu.memory_space<vmem>>, vector<1x1x256xi32>
    %7 = vector.shape_cast %6 : vector<1x1x256xi32> to vector<1x256xi32>
    %c255_i32 = arith.constant 255 : i32
    %8 = vector.broadcast %c255_i32 : i32 to vector<1x256xi32>
    %9 = arith.cmpi ne, %7, %8 : vector<1x256xi32>
    %cst = arith.constant dense<0xFF800000> : vector<256xf32>
    %10 = vector.multi_reduction <maximumf>, %5, %cst [0] : vector<21x256xf32> to vector<256xf32>
    %11 = vector.shape_cast %10 : vector<256xf32> to vector<1x256xf32>
    %12 = vector.broadcast %11 : vector<1x256xf32> to vector<21x256xf32>
    %13 = arith.subf %5, %12 : vector<21x256xf32>
    %14 = math.exp %13 : vector<21x256xf32>
    %cst_6 = arith.constant dense<0.000000e+00> : vector<256xf32>
    %15 = vector.multi_reduction <add>, %14, %cst_6 [0] : vector<21x256xf32> to vector<256xf32>
    %16 = vector.shape_cast %15 : vector<256xf32> to vector<1x256xf32>
    %17 = tpu.iota {dimensions = array<i32: 0>} : vector<21x256xi32>
    %18 = vector.broadcast %7 : vector<1x256xi32> to vector<21x256xi32>
    %19 = arith.cmpi eq, %17, %18 : vector<21x256xi32>
    %cst_7 = arith.constant 0.000000e+00 : f32
    %20 = vector.broadcast %cst_7 : f32 to vector<21x256xf32>
    %21 = arith.select %19, %13, %20 : vector<21x256xi1>, vector<21x256xf32>
    %cst_8 = arith.constant dense<0.000000e+00> : vector<256xf32>
    %22 = vector.multi_reduction <add>, %21, %cst_8 [0] : vector<21x256xf32> to vector<256xf32>
    %23 = vector.shape_cast %22 : vector<256xf32> to vector<1x256xf32>
    %24 = math.log %16 : vector<1x256xf32>
    %25 = arith.subf %24, %23 : vector<1x256xf32>
    %cst_9 = arith.constant 0.000000e+00 : f32
    %26 = vector.broadcast %cst_9 : f32 to vector<1x256xf32>
    %27 = arith.select %9, %25, %26 : vector<1x256xi1>, vector<1x256xf32>
    %28 = vector.shape_cast %27 : vector<1x256xf32> to vector<1x1x256xf32>
    %cst_10 = arith.constant dense<0.000000e+00> : vector<1xf32>
    %29 = vector.multi_reduction <add>, %28, %cst_10 [1, 2] : vector<1x1x256xf32> to vector<1xf32>
    %30 = vector.shape_cast %29 : vector<1xf32> to vector<1x1x1xf32>
    %31 = vector.extract %30[0, 0, 0] : f32 from vector<1x1x1xf32>
    %c2_i32 = arith.constant 2 : i32
    %32 = arith.muli %arg1, %c2_i32 : i32
    %33 = arith.addi %32, %arg2 : i32
    %34 = arith.index_cast %33 : i32 to index
    %35 = memref.load %arg3[%34] : memref<4xi32, #tpu.memory_space<smem>>
    %36 = tpu.iota {dimensions = array<i32: 2>} : vector<1x8x128xi32>
    %c0_11 = arith.constant 0 : index
    %c0_12 = arith.constant 0 : index
    %c0_13 = arith.constant 0 : index
    %37 = vector.load %arg6[%c0_11, %c0_12, %c0_13] : memref<1x8x128xf32, #tpu.memory_space<vmem>>, vector<1x8x128xf32>
    %38 = vector.broadcast %35 : i32 to vector<1x8x128xi32>
    %39 = arith.cmpi eq, %36, %38 : vector<1x8x128xi32>
    %cst_14 = arith.constant 0.000000e+00 : f32
    %40 = vector.broadcast %31 : f32 to vector<1x8x128xf32>
    %41 = vector.broadcast %cst_14 : f32 to vector<1x8x128xf32>
    %42 = arith.select %39, %40, %41 : vector<1x8x128xi1>, vector<1x8x128xf32>
    %43 = arith.addf %37, %42 : vector<1x8x128xf32>
    %c0_15 = arith.constant 0 : index
    %c0_16 = arith.constant 0 : index
    %c0_17 = arith.constant 0 : index
    %44 = vector.load %arg6[%c0_15, %c0_16, %c0_17] : memref<1x8x128xf32, #tpu.memory_space<vmem>>, vector<1x8x128xf32>
    tpu.vector_store %arg6[%c0_15, %c0_16, %c0_17], %43 {strides = array<i32>} : memref<1x8x128xf32, #tpu.memory_space<vmem>>, vector<1x8x128xf32>,
    return
  }
  func.func @transform_0(%arg0: i32, %arg1: i32, %arg2: i32, %arg3: memref<4xi32, #tpu.memory_space<smem>>) -> (i32, i32, i32) {
    %c2_i32 = arith.constant 2 : i32
    %0 = arith.muli %arg1, %c2_i32 : i32
    %1 = arith.addi %0, %arg2 : i32
    %c0_i32 = arith.constant 0 : i32
    %c0_i32_0 = arith.constant 0 : i32
    return %arg0, %c0_i32, %1 : i32, i32, i32
  }
  func.func @transform_1(%arg0: i32, %arg1: i32, %arg2: i32, %arg3: memref<4xi32, #tpu.memory_space<smem>>) -> (i32, i32, i32) {
    %c2_i32 = arith.constant 2 : i32
    %0 = arith.muli %arg1, %c2_i32 : i32
    %1 = arith.addi %0, %arg2 : i32
    %c0_i32 = arith.constant 0 : i32
    %c0_i32_0 = arith.constant 0 : i32
    return %arg0, %c0_i32, %1 : i32, i32, i32
  }
  func.func @transform_2(%arg0: i32, %arg1: i32, %arg2: i32, %arg3: memref<4xi32, #tpu.memory_space<smem>>) -> (i32, i32, i32) {
    %c2_i32 = arith.constant 2 : i32
    %0 = arith.muli %arg0, %c2_i32 : i32
    %1 = arith.addi %0, %arg1 : i32
    %c0_i32 = arith.constant 0 : i32
    %c0_i32_0 = arith.constant 0 : i32
    %c0_i32_1 = arith.constant 0 : i32
    return %1, %c0_i32, %c0_i32_0 : i32, i32, i32
  }
}

</mosaic_0001>

<llo_original>
// kernel: pyramid_loss.1
$region0: #{pyramid_loss.1}
  #allocation0 [shape = 'u32[]', space=smem, size = 0x4, offset = 0x4, fixed_abs, tag = 'smem constant byte address 0x4 - core index']
  #allocation1 [shape = 'u32[144,128]{1,0:T(1,128)}', space=vmem, size = 0x12000, scoped, tag = 'internal scratch']
  #allocation2 [shape = 's32[1]{0}', space=sflag, size = 0x4, scoped, tag = 'scoped memory for pyramid_loss.1']
  #allocation3 [shape = 'u8[512]{0}', space=smem, size = 0x200, scoped, tag = 'prefetched SMEM operand 0']
  %s0 = inlined_call_operand.vmem [shape: s32[4], index: 0, kind: input, shape index: {}]
  %s1 = inlined_call_operand.vmem [shape: bf16[2,21,1024], index: 1, kind: input, shape index: {}]
  %s2 = inlined_call_operand.vmem [shape: s32[2,1,1024], index: 2, kind: input, shape index: {}]
  %s3 = inlined_call_operand.vmem [shape: f32[4,8,128], index: 3, kind: output, shape index: {}]
  %s4 = sld [smem:[#allocation0]]
  $region83: #{pyramid_loss.1} parent=0
    _
  %s6 = ssub.s32 1, %s4
  %s7 = scalar_select 0, %s6, %s4
  %s8 = sshll.u32 %s0, 4
  %s9 = int_to_ptr.vmem [resolvable:$true] %s8
  %11 = dma.vmem_to_smem %s9, 16, [#allocation3], [#allocation2]
  %12 = dma.done [#allocation2], 16
  %13 = sfence
  $region1: #{pyramid_loss.1} parent=0
    #allocation4 [shape = 'u8[24576]{0}', space=vmem, size = 0x6000, scoped, tag = 'input window, operand 1']
    loop: start=0, step=1, limit=10
    $region2: #{pyramid_loss.1} parent=1 // loop_pre_header
      _
    $region3: #{pyramid_loss.1} parent=1 // loop_header
      %s15 = sphi 0, %s19
      %p16 = scmp.ge.s32.totalorder %s15, 10
      %s22 = sphi 0, %s41
      %s23 = sphi 0, %s37
      %s24 = sphi 0, %s33
      %s25 = sphi 0, %s22
      %s26 = sphi 0, %s23
      %s27 = sphi 0, %s24
      %s28 = sphi 0, %s25
      %s29 = sphi 0, %s26
      %s30 = sphi 0, %s27
      %s50 = sphi 0, %s52
      %s53 = sphi 0, %s50
      %s54 = sphi 0, %s53
      %s70 = sphi 0, %s54
      %s82 = sphi 0, %s84
      %s85 = sphi 0, %s82
      %s86 = sphi 0, %s85
      %s102 = sphi 0, %s86
      %s112 = sphi 0, %s114
      %s115 = sphi 0, %s112
      %s116 = sphi 0, %s115
      %s132 = sphi 0, %s116
    $region4: #{pyramid_loss.1} parent=1 // loop_header_branch
      %18 = sbr.rel (%p16) target = $region8
    $region5: #{pyramid_loss.1} parent=1 // loop_body
      %s20 = ssub.s32 %s15, 1
      %s21 = ssub.s32 %s15, 2
      %s31 = sadd.s32 1, %s24
      %p32 = scmp.ge.s32.totalorder %s31, 2
      %s33 = scalar_select %p32, 0, %s31
      %s34 = sadd.s32 1, %s23
      %s35 = scalar_select %p32, %s34, %s23
      %p36 = scmp.ge.s32.totalorder %s35, 2
      %s37 = scalar_select %p36, 0, %s35
      %s38 = sadd.s32 1, %s22
      %s39 = scalar_select %p36, %s38, %s22
      %p40 = scmp.ge.s32.totalorder %s39, 2
      %s41 = scalar_select %p40, 0, %s39
      %s42 = smul.u32 %s23, 2
      %s43 = sadd.s32 %s42, %s24
      %s44 = smul.u32 %s37, 2
      %s45 = sadd.s32 %s44, %s33
      %s46 = ssub.s32 %s22, %s41
      %s47 = ssub.s32 %s43, %s45
      %s48 = sor.u32 %s46, %s47
      %p49 = scmp.eq.s32.totalorder %s48, 0
      %s51 = sadd.s32 %s50, 1
      %s52 = scalar_select %p49, %s50, %s51
      %p55 = pneg %p49
      %p56 = scmp.eq.s32.totalorder %s15, 7
      %p57 = por %p55, %p56
      %p58 = scmp.ne.s32.totalorder %s50, %s53
      %p59 = scmp.eq.s32.totalorder %s15, 0
      %p60 = por %p58, %p59
      %p61 = scmp.ne.s32.totalorder %s50, %s53
      %p62 = scmp.eq.s32.totalorder %s20, 7
      %p63 = por %p61, %p62
      %p64 = scmp.ne.s32.totalorder %s53, %s54
      %p65 = scmp.eq.s32.totalorder %s20, 0
      %p66 = por %p64, %p65
      %p67 = scmp.ne.s32.totalorder %s53, %s54
      %p68 = scmp.eq.s32.totalorder %s21, 7
      %p69 = por %p67, %p68
      %p71 = scmp.ne.s32.totalorder %s54, %s70
      %p72 = scmp.eq.s32.totalorder %s21, 0
      %p73 = por %p71, %p72
      %s74 = smul.u32 %s23, 2
      %s75 = sadd.s32 %s74, %s24
      %s76 = smul.u32 %s37, 2
      %s77 = sadd.s32 %s76, %s33
      %s78 = ssub.s32 %s22, %s41
      %s79 = ssub.s32 %s75, %s77
      %s80 = sor.u32 %s78, %s79
      %p81 = scmp.eq.s32.totalorder %s80, 0
      %s83 = sadd.s32 %s82, 1
      %s84 = scalar_select %p81, %s82, %s83
      %p87 = pneg %p81
      %p88 = scmp.eq.s32.totalorder %s15, 7
      %p89 = por %p87, %p88
      %p90 = scmp.ne.s32.totalorder %s82, %s85
      %p91 = scmp.eq.s32.totalorder %s15, 0
      %p92 = por %p90, %p91
      %p93 = scmp.ne.s32.totalorder %s82, %s85
      %p94 = scmp.eq.s32.totalorder %s20, 7
      %p95 = por %p93, %p94
      %p96 = scmp.ne.s32.totalorder %s85, %s86
      %p97 = scmp.eq.s32.totalorder %s20, 0
      %p98 = por %p96, %p97
      %p99 = scmp.ne.s32.totalorder %s85, %s86
      %p100 = scmp.eq.s32.totalorder %s21, 7
      %p101 = por %p99, %p100
      %p103 = scmp.ne.s32.totalorder %s86, %s102
      %p104 = scmp.eq.s32.totalorder %s21, 0
      %p105 = por %p103, %p104
      %s106 = smul.u32 %s22, 2
      %s107 = sadd.s32 %s106, %s23
      %s108 = smul.u32 %s41, 2
      %s109 = sadd.s32 %s108, %s37
      %s110 = ssub.s32 %s107, %s109
      %p111 = scmp.eq.s32.totalorder %s110, 0
      %s113 = sadd.s32 %s112, 1
      %s114 = scalar_select %p111, %s112, %s113
      %p117 = pneg %p111
      %p118 = scmp.eq.s32.totalorder %s15, 7
      %p119 = por %p117, %p118
      %p120 = scmp.ne.s32.totalorder %s112, %s115
      %p121 = scmp.eq.s32.totalorder %s15, 0
      %p122 = por %p120, %p121
      %p123 = scmp.ne.s32.totalorder %s112, %s115
      %p124 = scmp.eq.s32.totalorder %s20, 7
      %p125 = por %p123, %p124
      %p126 = scmp.ne.s32.totalorder %s115, %s116
      %p127 = scmp.eq.s32.totalorder %s20, 0
      %p128 = por %p126, %p127
      %p129 = scmp.ne.s32.totalorder %s115, %s116
      %p130 = scmp.eq.s32.totalorder %s21, 7
      %p131 = por %p129, %p130
      %p133 = scmp.ne.s32.totalorder %s116, %s132
      %p134 = scmp.eq.s32.totalorder %s21, 0
      %p135 = por %p133, %p134
      %p136 = scmp.le.s32.totalorder 1, %s15
      %p137 = scmp.lt.s32.totalorder %s15, 9
      %p138 = pnand %p136, %p137
      %p139 = pneg %p138
      // Predicated region
      $region9: #{pyramid_loss.1} parent=5 // pred_check
        _
      $region10: #{pyramid_loss.1} parent=5 // pred_check_branch
        %141 = sbr.rel (%p138) target = $region12
      $region11: #{pyramid_loss.1} parent=5 // pred_region
        %s142 = ssub.s32 %s15, 1
      $region12: #{pyramid_loss.1} parent=5 // pred_fallthru
        _
      %p143 = scmp.lt.s32.totalorder %s15, 8
      // Predicated region
      $region13: #{pyramid_loss.1} parent=5 // pred_check
        %p144 = pneg %p143
      $region14: #{pyramid_loss.1} parent=5 // pred_check_branch
        %146 = sbr.rel (%p144) target = $region16
      $region15: #{pyramid_loss.1} parent=5 // pred_region
        // Predicated region
        $region17: #{pyramid_loss.1} parent=15 // pred_check
          %p147 = pneg %p60
        $region18: #{pyramid_loss.1} parent=15 // pred_check_branch
          %149 = sbr.rel (%p147) target = $region20
        $region19: #{pyramid_loss.1} parent=15 // pred_region
          %s150 = sand.u32 %s50, 1
          %s151 = sand.u32 %s50, 1
          %s152 = smul.addr %s151, 24
          %s153 = scalar_lea.vmem [#allocation4], %s152
          %s154 = smul.u32 %s23, 2
          %s155 = sadd.s32 %s154, %s24
          %s156 = smul.u32 2, %s155
          %s157 = smul.addr %s22, 24
          %s158 = sadd.s32 %s156, %s157
          %s159 = smul.addr %s158, 4
          %s160 = scalar_lea.vmem %s1, %s159
          // Predicated region
          $region21: #{pyramid_loss.1} parent=19 // pred_check
            _
          $region22: #{pyramid_loss.1} parent=19 // pred_check_branch
            %162 = sbr.rel (0) target = $region24
          $region23: #{pyramid_loss.1} parent=19 // pred_region
            // Predicated region
            $region25: #{pyramid_loss.1} parent=23 // pred_check
              _
            $region26: #{pyramid_loss.1} parent=23 // pred_check_branch
              %164 = sbr.rel (0) target = $region28
            $region27: #{pyramid_loss.1} parent=23 // pred_region
              // Predicated region
              $region40: #{pyramid_loss.1} parent=27 // pred_check
                _
              $region41: #{pyramid_loss.1} parent=27 // pred_check_branch
                %183 = sbr.rel (0) target = $region43
              $region42: #{pyramid_loss.1} parent=27 // pred_region
                loop: start=0, step=1, limit=1
                $region44: #{pyramid_loss.1} parent=42 // loop_pre_header
                  _
                $region45: #{pyramid_loss.1} parent=42 // loop_header
                  %s185 = sphi 0, %s189
                  %p186 = scmp.ge.s32.totalorder %s185, 1
                  %s190 = sphi %s160, %s160
                  %s191 = sphi %s153, %s153
                $region46: #{pyramid_loss.1} parent=42 // loop_header_branch
                  %188 = sbr.rel (%p186) target = $region50
                $region47: #{pyramid_loss.1} parent=42 // loop_body
                  %v192 = vld [vmem:[%s190] sm:$0xff]
                  %193 = vst [vmem:[%s191] sm:$0xff] %v192
                  %v194 = vld [vmem:[%s190 + $0x20] sm:$0xff]
                  %195 = vst [vmem:[%s191 + $0x8] sm:$0xff] %v194
                  %v196 = vld [vmem:[%s190 + $0x40] sm:$0xff]
                  %197 = vst [vmem:[%s191 + $0x10] sm:$0xff] %v196
                $region48: #{pyramid_loss.1} parent=42 // loop_footer
                  %s189 = sadd.s32 1, %s185
                $region49: #{pyramid_loss.1} parent=42 // loop_footer_branch
                  %184 = sbr.rel target = $region45
                $region50: #{pyramid_loss.1} parent=42 // loop_exit
                  _
              $region43: #{pyramid_loss.1} parent=27 // pred_fallthru
                _
              // Predicated region
              $region51: #{pyramid_loss.1} parent=27 // pred_check
                _
              $region52: #{pyramid_loss.1} parent=27 // pred_check_branch
                %199 = sbr.rel target = $region54
              $region53: #{pyramid_loss.1} parent=27 // pred_region
                _
              $region54: #{pyramid_loss.1} parent=27 // pred_fallthru
                _
            $region28: #{pyramid_loss.1} parent=23 // pred_fallthru
              _
            // Predicated region
            $region29: #{pyramid_loss.1} parent=23 // pred_check
              _
            $region30: #{pyramid_loss.1} parent=23 // pred_check_branch
              %166 = sbr.rel target = $region32
            $region31: #{pyramid_loss.1} parent=23 // pred_region
              loop: start=0, step=1, limit=1
              $region33: #{pyramid_loss.1} parent=31 // loop_pre_header
                _
              $region34: #{pyramid_loss.1} parent=31 // loop_header
                %s169 = sphi 0, %s173
                %p170 = scmp.ge.s32.totalorder %s169, 1
                %s174 = sphi %s160, %s160
                %s175 = sphi %s153, %s153
              $region35: #{pyramid_loss.1} parent=31 // loop_header_branch
                %172 = sbr.rel (%p170) target = $region39
              $region36: #{pyramid_loss.1} parent=31 // loop_body
                %v176 = vld [vmem:[%s174] sm:$0xff]
                %177 = vst [vmem:[%s175] sm:$0xff] %v176
                %v178 = vld [vmem:[%s174 + $0x20] sm:$0xff]
                %179 = vst [vmem:[%s175 + $0x8] sm:$0xff] %v178
                %v180 = vld [vmem:[%s174 + $0x40] sm:$0xff]
                %181 = vst [vmem:[%s175 + $0x10] sm:$0xff] %v180
              $region37: #{pyramid_loss.1} parent=31 // loop_footer
                %s173 = sadd.s32 1, %s169
              $region38: #{pyramid_loss.1} parent=31 // loop_footer_branch
                %168 = sbr.rel target = $region34
              $region39: #{pyramid_loss.1} parent=31 // loop_exit
                _
            $region32: #{pyramid_loss.1} parent=23 // pred_fallthru
              _
          $region24: #{pyramid_loss.1} parent=19 // pred_fallthru
            _
          %200 = vnop
        $region20: #{pyramid_loss.1} parent=15 // pred_fallthru
          _
        // Predicated region
        $region55: #{pyramid_loss.1} parent=15 // pred_check
          %p201 = pneg %p92
        $region56: #{pyramid_loss.1} parent=15 // pred_check_branch
          %203 = sbr.rel (%p201) target = $region58
        $region57: #{pyramid_loss.1} parent=15 // pred_region
          %s204 = smul.u32 %s23, 2
          %s205 = sadd.s32 %s204, %s24
          %s206 = smul.u32 2, %s205
          %p207 = scmp.lt.s32.totalorder %s22, 1
          %s208 = scalar_select %p207, %s22, 1
          %p209 = scmp.lt.s32.totalorder %s206, 7
          %s210 = scalar_select %p209, %s206, 7
          %s211 = smul.addr %s208, 8
          %s212 = sadd.s32 %s210, %s211
          %s213 = scalar_lea.vmem %s2, %s212
          %s214 = smul.u32 %s23, 2
          %s215 = sadd.s32 %s214, %s24
          %s216 = smul.u32 2, %s215
        $region58: #{pyramid_loss.1} parent=15 // pred_fallthru
          _
      $region16: #{pyramid_loss.1} parent=5 // pred_fallthru
        _
      %p217 = scmp.le.s32.totalorder 1, %s15
      %p218 = scmp.lt.s32.totalorder %s15, 9
      %p219 = pnand %p217, %p218
      %p220 = pneg %p219
      // Predicated region
      $region59: #{pyramid_loss.1} parent=5 // pred_check
        _
      $region60: #{pyramid_loss.1} parent=5 // pred_check_branch
        %222 = sbr.rel (%p219) target = $region62
      $region61: #{pyramid_loss.1} parent=5 // pred_region
        %s223 = ssub.s32 %s15, 1
        %s224 = sand.u32 %s53, 1
        %s225 = sand.u32 %s53, 1
        %s226 = smul.addr %s225, 24
        %s227 = scalar_lea.vmem [#allocation4], %s226
        // Predicated region
        $region63: #{pyramid_loss.1} parent=61 // pred_check
          %p228 = pneg %p66
        $region64: #{pyramid_loss.1} parent=61 // pred_check_branch
          %230 = sbr.rel (%p228) target = $region66
        $region65: #{pyramid_loss.1} parent=61 // pred_region
          _
        $region66: #{pyramid_loss.1} parent=61 // pred_fallthru
          _
        %s231 = sand.u32 %s53, 1
        %s232 = sand.u32 %s53, 1
        %s233 = smul.addr %s232, 24
        %s234 = scalar_lea.vmem [#allocation4], %s233
        %p235 = pneg %p66
        %p236 = pneg %p63
        %s237 = smul.u32 %s26, 2
        %s238 = sadd.s32 %s237, %s27
        %s239 = smul.u32 2, %s238
        %p240 = scmp.lt.s32.totalorder %s25, 1
        %s241 = scalar_select %p240, %s25, 1
        %p242 = scmp.lt.s32.totalorder %s239, 7
        %s243 = scalar_select %p242, %s239, 7
        %s244 = smul.addr %s241, 8
        %s245 = sadd.s32 %s243, %s244
        %s246 = scalar_lea.vmem %s2, %s245
        %p247 = pneg %p98
        %p248 = pneg %p95
        %p249 = pneg %p128
        %p250 = pneg %p125
        %s251 = smul.u32 %s25, 2
        %s252 = sadd.s32 %s251, %s26
        %p253 = scmp.lt.s32.totalorder %s252, 3
        %s254 = scalar_select %p253, %s252, 3
        %s255 = smul.addr %s254, 8
        %s256 = scalar_lea.vmem %s3, %s255
        %s257 = smul.u32 %s26, 2
        %s258 = sadd.s32 %s257, %s27
        %s259 = smul.u32 2, %s258
        %s260 = smul.u32 %s26, 2
        %s261 = sadd.s32 %s260, %s27
        %s262 = smul.u32 2, %s261
        %p263 = scmp.lt.s32.totalorder %s25, 1
        %s264 = scalar_select %p263, %s25, 1
        %p265 = scmp.lt.s32.totalorder %s262, 7
        %s266 = scalar_select %p265, %s262, 7
        %s267 = smul.addr %s264, 8
        %s268 = sadd.s32 %s266, %s267
        %s269 = scalar_lea.vmem %s2, %s268
        %s270 = smul.u32 %s26, 2
        %s271 = sadd.s32 %s270, %s27
        %s272 = smul.u32 2, %s271
        %s273 = smul.u32 %s25, 2
        %s274 = sadd.s32 %s273, %s26
        %p275 = scmp.lt.s32.totalorder %s274, 3
        %s276 = scalar_select %p275, %s274, 3
        %s277 = smul.addr %s276, 8
        %s278 = scalar_lea.vmem %s3, %s277
        %s279 = smul.u32 %s25, 2
        %s280 = sadd.s32 %s279, %s26
        %p281 = scmp.eq.s32.totalorder %s27, 0
        // Predicated region
        $region67: #{pyramid_loss.1} parent=61 // pred_check
          %p282 = pneg %p281
        $region68: #{pyramid_loss.1} parent=61 // pred_check_branch
          %284 = sbr.rel (%p282) target = $region70
        $region69: #{pyramid_loss.1} parent=61 // pred_region
          %285 = vst [vmem:[%s278] sm:$0xff] 0.0
        $region70: #{pyramid_loss.1} parent=61 // pred_fallthru
          _
        %v286 = vld [vmem:[%s227] sm:$0xff]
        %v287 = vld [vmem:[%s227 + $0x8] sm:$0xff]
        %v288 = vld [vmem:[%s227 + $0x10] sm:$0x77]
        %v289 = vunpack.c.l.bf16 %v286
        %v290 = vunpack.c.h.bf16 %v286
        %v291 = vunpack.c.l.bf16 %v287
        %v292 = vunpack.c.h.bf16 %v287
        %v293 = vunpack.c.l.bf16 %v288
        %v294 = vunpack.c.h.bf16 %v288
        %v295 = vld [vmem:[%s269] sm:$0x3]
        %vm296 = vcmp.ne.s32.totalorder %v295, 255
        %vm297 = vcmask 1044480
        %v298 = vsel %vm297, %v293, -inf
        %v299 = vmax.f32 %v289, %v298
        %v300 = vmax.f32 %v299, %v291
        %v301 = vrot.slane %v300, 4
        %v302 = vmax.f32 %v300, %v301
        %v303 = vrot.slane %v302, 2
        %v304 = vmax.f32 %v302, %v303
        %v305 = vrot.slane %v304, 1
        %v306 = vmax.f32 %v304, %v305
        %v307 = vsel %vm297, %v294, -inf
        %v308 = vmax.f32 %v290, %v307
        %v309 = vmax.f32 %v308, %v292
        %v310 = vrot.slane %v309, 4
        %v311 = vmax.f32 %v309, %v310
        %v312 = vrot.slane %v311, 2
        %v313 = vmax.f32 %v311, %v312
        %v314 = vrot.slane %v313, 1
        %v315 = vmax.f32 %v313, %v314
        %v316 = vsub.f32 %v289, %v306
        %v317 = vsub.f32 %v290, %v315
        %v318 = vsub.f32 %v291, %v306
        %v319 = vsub.f32 %v292, %v315
        %v320 = vsub.f32 %v293, %v306
        %v321 = vsub.f32 %v294, %v315
        %v322 = vmul.f32 %v316, 1.442695
        %v323 = vpow.pop %v322
        %v324 = vmul.f32 %v317, 1.442695
        %v325 = vpow.pop %v324
        %v326 = vmul.f32 %v318, 1.442695
        %v327 = vpow.pop %v326
        %v328 = vmul.f32 %v319, 1.442695
        %v329 = vpow.pop %v328
        %v330 = vmul.f32 %v320, 1.442695
        %v331 = vpow.pop %v330
        %v332 = vmul.f32 %v321, 1.442695
        %v333 = vpow.pop %v332
        %v334 = vadd.f32 %v323, %v327
        %v335 = vsel %vm297, %v331, 0.0
        %v336 = vadd.f32 %v334, %v335
        %v337 = vrot.slane %v336, 4
        %v338 = vadd.f32 %v336, %v337
        %v339 = vrot.slane %v338, 2
        %v340 = vadd.f32 %v338, %v339
        %v341 = vrot.slane %v340, 1
        %v342 = vadd.f32 %v340, %v341
        %v343 = vadd.f32 %v325, %v329
        %v344 = vsel %vm297, %v333, 0.0
        %v345 = vadd.f32 %v343, %v344
        %v346 = vrot.slane %v345, 4
        %v347 = vadd.f32 %v345, %v346
        %v348 = vrot.slane %v347, 2
        %v349 = vadd.f32 %v347, %v348
        %v350 = vrot.slane %v349, 1
        %v351 = vadd.f32 %v349, %v350
        %v352 = vlaneseq
        %v353 = vshrl.u32 %v352, 7
        %v354 = vadd.s32 %v353, 8
        %v355 = vadd.s32 %v353, 16
        %v356 = vlaneseq
        %v357 = vshrl.u32 %v356, 7
        %v358 = vsub.s32 0, %v357
        %v359 = vrot.slane %v295, %v358
        %v360 = vlaneseq
        %v361 = vshrl.u32 %v360, 7
        %v362 = vsub.s32 1, %v361
        %v363 = vrot.slane %v295, %v362
        %vm364 = vcmp.eq.s32.totalorder %v353, %v359
        %vm365 = vcmp.eq.s32.totalorder %v353, %v363
        %vm366 = vcmp.eq.s32.totalorder %v354, %v359
        %vm367 = vcmp.eq.s32.totalorder %v354, %v363
        %vm368 = vcmp.eq.s32.totalorder %v355, %v359
        %vm369 = vcmp.eq.s32.totalorder %v355, %v363
        %v370 = vsel %vm364, %v316, 0.0
        %v371 = vsel %vm365, %v317, 0.0
        %v372 = vsel %vm366, %v318, 0.0
        %v373 = vsel %vm367, %v319, 0.0
        %v374 = vsel %vm368, %v320, 0.0
        %v375 = vsel %vm369, %v321, 0.0
        %v376 = vadd.f32 %v370, %v372
        %v377 = vsel %vm297, %v374, 0.0
        %v378 = vadd.f32 %v376, %v377
        %v379 = vrot.slane %v378, 4
        %v380 = vadd.f32 %v378, %v379
        %v381 = vrot.slane %v380, 2
        %v382 = vadd.f32 %v380, %v381
        %v383 = vrot.slane %v382, 1
        %v384 = vadd.f32 %v382, %v383
        %v385 = vadd.f32 %v371, %v373
        %v386 = vsel %vm297, %v375, 0.0
        %v387 = vadd.f32 %v385, %v386
        %v388 = vrot.slane %v387, 4
        %v389 = vadd.f32 %v387, %v388
        %v390 = vrot.slane %v389, 2
        %v391 = vadd.f32 %v389, %v390
        %v392 = vrot.slane %v391, 1
        %v393 = vadd.f32 %v391, %v392
        %v394 = vlog2.pop %v342
        %v395 = vmul.f32 %v394, 0.6931472
        %v396 = vlog2.pop %v351
        %v397 = vmul.f32 %v396, 0.6931472
        %v398 = vsub.f32 %v395, %v384
        %v399 = vsub.f32 %v397, %v393
        %v402 = vcombine.low %v398, %v399
        %v404 = vunpack.c.l.s4 1966171168
        %v405 = vunpack.c.0.s8 %v404
        %v406 = vlaneseq
        %v407 = vshrl.u32 %v406, 7
        %v408 = vsub.s32 %v405, %v407
        %v409 = vrot.slane %v402, %v408
        %v411 = vunpack.c.l.s4 1966171168
        %v412 = vunpack.c.0.s8 %v411
        %v413 = vlaneseq
        %v414 = vshrl.u32 %v413, 7
        %v415 = vsub.s32 %v412, %v414
        %v416 = vrot.slane %v409, %v415
        %v418 = vsel %vm296, %v416, 0.0
        %v420 = vlaneseq
        %v421 = vshrl.u32 %v420, 7
        %v422 = vsub.s32 0, %v421
        %v423 = vrot.slane %v418, %v422
        %v424 = vlaneseq
        %v425 = vshrl.u32 %v424, 7
        %v426 = vsub.s32 1, %v425
        %v427 = vrot.slane %v418, %v426
        %vm430 = vcmask 1040384
        %v431 = vsel %vm430, %v423, 0.0
        %v432 = vsel %vm430, %v427, 0.0
        %v433 = vadd.f32 %v431, %v432
        %434 = vadd.xlane.f32.xlu0 %v433
        %v435 = vpop.xlane.xlu0 %434
        %v436 = vrot.slane %v435, 4
        %v437 = vadd.f32 %v435, %v436
        %v438 = vrot.slane %v437, 2
        %v439 = vadd.f32 %v437, %v438
        %v440 = vrot.slane %v439, 1
        %v441 = vadd.f32 %v439, %v440
        %s442 = vtos %v441
        %s443 = smul.u32 %s26, 2
        %s444 = sadd.s32 %s443, %s27
        %s445 = sld [smem:[#allocation3 + %s444]]
        %v446 = vlaneseq
        %v447 = vand.u32 %v446, 127
        %v448 = vld [vmem:[%s278] sm:$0xff]
        %v449 = vstv %s445
        %vm450 = vcmp.eq.s32.totalorder %v447, %v449
        %v451 = vstv %s442
        %v452 = vsel %vm450, %v451, 0.0
        %v453 = vadd.f32 %v448, %v452
        %454 = vst [vmem:[%s278] sm:$0xff] %v453
        %s455 = smul.u32 %s25, 2
        %s456 = sadd.s32 %s455, %s26
        %p457 = scmp.lt.s32.totalorder %s456, 3
        %s458 = scalar_select %p457, %s456, 3
        %s459 = smul.addr %s458, 8
        %s460 = scalar_lea.vmem %s3, %s459
        // Predicated region
        $region71: #{pyramid_loss.1} parent=61 // pred_check
          %p461 = pneg %p125
        $region72: #{pyramid_loss.1} parent=61 // pred_check_branch
          %463 = sbr.rel (%p461) target = $region74
        $region73: #{pyramid_loss.1} parent=61 // pred_region
          %s464 = smul.u32 %s25, 2
          %s465 = sadd.s32 %s464, %s26
        $region74: #{pyramid_loss.1} parent=61 // pred_fallthru
          _
      $region62: #{pyramid_loss.1} parent=5 // pred_fallthru
        _
      %p466 = scmp.le.s32.totalorder 2, %s15
      // Predicated region
      $region75: #{pyramid_loss.1} parent=5 // pred_check
        %p467 = pneg %p466
      $region76: #{pyramid_loss.1} parent=5 // pred_check_branch
        %469 = sbr.rel (%p467) target = $region78
      $region77: #{pyramid_loss.1} parent=5 // pred_region
        %s470 = ssub.s32 %s15, 2
        // Predicated region
        $region79: #{pyramid_loss.1} parent=77 // pred_check
          %p471 = pneg %p131
        $region80: #{pyramid_loss.1} parent=77 // pred_check_branch
          %473 = sbr.rel (%p471) target = $region82
        $region81: #{pyramid_loss.1} parent=77 // pred_region
          %s474 = smul.u32 %s28, 2
          %s475 = sadd.s32 %s474, %s29
          %p476 = scmp.lt.s32.totalorder %s475, 3
          %s477 = scalar_select %p476, %s475, 3
          %s478 = smul.addr %s477, 8
          %s479 = scalar_lea.vmem %s3, %s478
        $region82: #{pyramid_loss.1} parent=77 // pred_fallthru
          _
      $region78: #{pyramid_loss.1} parent=5 // pred_fallthru
        _
    $region6: #{pyramid_loss.1} parent=1 // loop_footer
      %s19 = sadd.s32 1, %s15
    $region7: #{pyramid_loss.1} parent=1 // loop_footer_branch
      %14 = sbr.rel target = $region3
    $region8: #{pyramid_loss.1} parent=1 // loop_exit
      _

</llo_original>
